<compile_context>
chip_gen: v5e
topology: v5e:2x2
jax: 0.10.0
libtpu: 0.0.40
codegen_flags: <defaults>
</compile_context>

<pallas_src>
import jax
import jax.numpy as jnp
from jax import lax
from jax.experimental import pallas as pl
from jax.experimental.pallas import tpu as pltpu


def _round_up(x, m):
    return (x + m - 1) // m * m


def _pointer_head_kernel(q_ref, k_ref, wq_ref, bq_ref, wk_ref, bk_ref, out_ref):
    # q_ref : (Bb, T, D)   compute dtype (bf16 or f32), scaling folded into wq/bq
    # k_ref : (Bb, S, D)   compute dtype
    # wq_ref/wk_ref : (D, D) compute dtype (already transposed: y = x @ W_t + b)
    # bq_ref/bk_ref : (1, D) float32
    # out_ref : (Bb, T, S) float32
    Bb, T, D = q_ref.shape
    S = k_ref.shape[1]
    cdt = q_ref.dtype

    # Dense-M projections: one matmul over all Bb*T (resp. Bb*S) rows.
    q2 = q_ref[...].reshape(Bb * T, D)
    k2 = k_ref[...].reshape(Bb * S, D)

    qp = jnp.dot(q2, wq_ref[...], preferred_element_type=jnp.float32) + bq_ref[...]
    kp = jnp.dot(k2, wk_ref[...], preferred_element_type=jnp.float32) + bk_ref[...]

    qp = qp.astype(cdt).reshape(Bb, T, D)
    kp = kp.astype(cdt).reshape(Bb, S, D)

    # Batched NT contraction: (Bb, T, D) x (Bb, S, D) -> (Bb, T, S),
    # contracting the last dims (no explicit transpose).
    out_ref[...] = lax.dot_general(
        qp, kp,
        dimension_numbers=(((2,), (2,)), ((0,), (0,))),
        preferred_element_type=jnp.float32)


def pointer_head_forward(query, key, params, *, compute_dtype=jnp.bfloat16,
                         block_b=None):
    """query: (tgt_len, bsz, D), key: (src_len, bsz, D) — same as the torch module."""
    tgt_len, bsz, embed_dim = query.shape
    src_len = key.shape[0]
    assert key.shape == (src_len, bsz, embed_dim)

    scaling = float(embed_dim) ** (-0.5)

    # ---- glue: seq-major -> batch-major; fold scaling into q projection ----
    q_b = jnp.transpose(query, (1, 0, 2))            # (B, T, D)
    k_b = jnp.transpose(key, (1, 0, 2))              # (B, S, D)

    wq_t = (params["wq"] * scaling).T                # (D, D): y = x @ (s*W)^T + s*b
    wk_t = params["wk"].T
    bq = (params["bq"] * scaling).reshape(1, embed_dim)
    bk = params["bk"].reshape(1, embed_dim)

    # ---- pad to TPU-friendly shapes ----------------------------------------
    sub = 16 if compute_dtype == jnp.bfloat16 else 8   # sublane multiple
    d_pad = _round_up(embed_dim, 128)                  # dense lanes / MXU K
    t_pad = _round_up(tgt_len, sub)                    # sublane-aligned rows
    s_pad = _round_up(src_len, 128)                    # lane-dense output stores

    csize = jnp.dtype(compute_dtype).itemsize

    # ---- pick how many batches per grid step --------------------------------
    if block_b is None:
        block_b = max(1, min(bsz, 256 // t_pad if t_pad < 256 else 1))
        # keep per-step q/k/out tiles under a conservative budget
        budget = 6 * 1024 * 1024
        def tiles_bytes(bb):
            return (bb * t_pad * d_pad * csize
                    + bb * s_pad * d_pad * csize
                    + bb * t_pad * s_pad * 4)
        while block_b > 1 and tiles_bytes(block_b) > budget:
            block_b //= 2
    b_pad = _round_up(bsz, block_b)

    def pad_to(x, shape):
        pads = [(0, s - xs) for xs, s in zip(x.shape, shape)]
        return jnp.pad(x, pads) if any(p[1] for p in pads) else x

    q_p = pad_to(q_b, (b_pad, t_pad, d_pad)).astype(compute_dtype)
    k_p = pad_to(k_b, (b_pad, s_pad, d_pad)).astype(compute_dtype)
    wq_p = pad_to(wq_t, (d_pad, d_pad)).astype(compute_dtype)
    wk_p = pad_to(wk_t, (d_pad, d_pad)).astype(compute_dtype)
    bq_p = pad_to(bq, (1, d_pad)).astype(jnp.float32)
    bk_p = pad_to(bk, (1, d_pad)).astype(jnp.float32)

    # ---- VMEM budget (double-buffered inputs + output + weights) ------------
    tile_bytes = (block_b * t_pad * d_pad * csize       # q tile
                  + block_b * s_pad * d_pad * csize     # k tile
                  + 2 * d_pad * d_pad * csize           # weights
                  + 2 * d_pad * 4                       # biases
                  + block_b * t_pad * s_pad * 4)        # out tile
    vmem_limit = int(min(48 * 1024 * 1024,
                         max(32 * 1024 * 1024, 2 * tile_bytes + (4 << 20))))

    grid_spec = pltpu.PrefetchScalarGridSpec(
        num_scalar_prefetch=0,
        grid=(b_pad // block_b,),
        in_specs=[
            pl.BlockSpec((block_b, t_pad, d_pad), lambda b: (b, 0, 0)),
            pl.BlockSpec((block_b, s_pad, d_pad), lambda b: (b, 0, 0)),
            pl.BlockSpec((d_pad, d_pad), lambda b: (0, 0)),
            pl.BlockSpec((1, d_pad), lambda b: (0, 0)),
            pl.BlockSpec((d_pad, d_pad), lambda b: (0, 0)),
            pl.BlockSpec((1, d_pad), lambda b: (0, 0)),
        ],
        out_specs=pl.BlockSpec((block_b, t_pad, s_pad), lambda b: (b, 0, 0)),
    )

    out_padded = pl.pallas_call(
        _pointer_head_kernel,
        out_shape=jax.ShapeDtypeStruct((b_pad, t_pad, s_pad), jnp.float32),
        grid_spec=grid_spec,
        compiler_params=pltpu.CompilerParams(
            dimension_semantics=("parallel",),
            vmem_limit_bytes=vmem_limit),
    )(q_p, k_p, wq_p, bq_p, wk_p, bk_p)

    # glue: strip padding
    return out_padded[:bsz, :tgt_len, :src_len]


def pointer_head_reference(query, key, params):
    """Plain-JAX reference mirroring the torch forward exactly (f32)."""
    tgt_len, bsz, embed_dim = query.shape
    scaling = float(embed_dim) ** (-0.5)
    q = (query @ params["wq"].T + params["bq"]) * scaling   # (T, B, D)
    k = key @ params["wk"].T + params["bk"]                 # (S, B, D)
    q = jnp.transpose(q, (1, 0, 2))                         # (B, T, D)
    k = jnp.transpose(k, (1, 0, 2))                         # (B, S, D)
    return jnp.einsum("btd,bsd->bts", q, k)


if __name__ == "__main__":
    embed_dim = 32
    tgt_len = 8
    src_len = 8
    bsz = 2

    key0 = jax.random.PRNGKey(0)
    k_q, k_k, k_wq, k_bq, k_wk, k_bk = jax.random.split(key0, 6)

    query = jax.random.normal(k_q, (tgt_len, bsz, embed_dim), jnp.float32)
    keyx = jax.random.normal(k_k, (src_len, bsz, embed_dim), jnp.float32)

    # nn.Linear-shaped parameters: weight (out,in), bias (out,)
    bound = 1.0 / (embed_dim ** 0.5)
    params = {
        "wq": jax.random.uniform(k_wq, (embed_dim, embed_dim), jnp.float32, -bound, bound),
        "bq": jax.random.uniform(k_bq, (embed_dim,), jnp.float32, -bound, bound),
        "wk": jax.random.uniform(k_wk, (embed_dim, embed_dim), jnp.float32, -bound, bound),
        "bk": jax.random.uniform(k_bk, (embed_dim,), jnp.float32, -bound, bound),
    }

    ref = pointer_head_reference(query, keyx, params)

    # Exact-semantics path (f32 on the MXU), tight tolerance.
    attn_f32 = jax.block_until_ready(
        pointer_head_forward(query, keyx, params, compute_dtype=jnp.float32))
    assert attn_f32.shape == (bsz, tgt_len, src_len)
    assert jnp.allclose(attn_f32, ref, atol=1e-4, rtol=1e-4), "f32 mismatch vs reference"

    # Fast path (bf16 MXU inputs, f32 accumulation), bf16-appropriate tolerance.
    attn_bf16 = jax.block_until_ready(
        pointer_head_forward(query, keyx, params, compute_dtype=jnp.bfloat16))
    assert attn_bf16.shape == (bsz, tgt_len, src_len)
    assert jnp.allclose(attn_bf16, ref, atol=5e-2, rtol=5e-2), "bf16 mismatch vs reference"

    print("KERNEL_OK")
</pallas_src>

<mosaic_0001>
module attributes {stable_mosaic.version = 11 : i64} {
  func.func @_pointer_head_kernel(%arg0: i32, %arg1: memref<2x8x128xf32, #tpu.memory_space<vmem>>, %arg2: memref<2x128x128xf32, #tpu.memory_space<vmem>>, %arg3: memref<128x128xf32, #tpu.memory_space<vmem>>, %arg4: memref<1x128xf32, #tpu.memory_space<vmem>>, %arg5: memref<128x128xf32, #tpu.memory_space<vmem>>, %arg6: memref<1x128xf32, #tpu.memory_space<vmem>>, %arg7: memref<2x8x128xf32, #tpu.memory_space<vmem>>) attributes {dimension_semantics = [#tpu.dimension_semantics<parallel>], iteration_bounds = array<i64: 1>, scalar_prefetch = 0 : i64, scratch_operands = 0 : i64, tpu.core_type = #tpu.core_type<tc>, window_params = [{transform_indices = @transform_0, window_bounds = array<i64: 2, 8, 128>}, {transform_indices = @transform_1, window_bounds = array<i64: 2, 128, 128>}, {pipeline_mode = #tpu.pipeline_mode<synchronous>, transform_indices = @transform_2, window_bounds = array<i64: 128, 128>}, {pipeline_mode = #tpu.pipeline_mode<synchronous>, transform_indices = @transform_3, window_bounds = array<i64: 1, 128>}, {pipeline_mode = #tpu.pipeline_mode<synchronous>, transform_indices = @transform_4, window_bounds = array<i64: 128, 128>}, {pipeline_mode = #tpu.pipeline_mode<synchronous>, transform_indices = @transform_5, window_bounds = array<i64: 1, 128>}, {transform_indices = @transform_6, window_bounds = array<i64: 2, 8, 128>}]} {
    %c0 = arith.constant 0 : index
    %c0_0 = arith.constant 0 : index
    %c0_1 = arith.constant 0 : index
    %0 = vector.load %arg1[%c0, %c0_0, %c0_1] : memref<2x8x128xf32, #tpu.memory_space<vmem>>, vector<2x8x128xf32>
    %1 = vector.shape_cast %0 : vector<2x8x128xf32> to vector<16x128xf32>
    %c0_2 = arith.constant 0 : index
    %c0_3 = arith.constant 0 : index
    %c0_4 = arith.constant 0 : index
    %2 = vector.load %arg2[%c0_2, %c0_3, %c0_4] : memref<2x128x128xf32, #tpu.memory_space<vmem>>, vector<2x128x128xf32>
    %3 = vector.shape_cast %2 : vector<2x128x128xf32> to vector<256x128xf32>
    %c0_5 = arith.constant 0 : index
    %c0_6 = arith.constant 0 : index
    %4 = vector.load %arg3[%c0_5, %c0_6] : memref<128x128xf32, #tpu.memory_space<vmem>>, vector<128x128xf32>
    %cst = arith.constant dense<0.000000e+00> : vector<16x128xf32>
    %5 = tpu.matmul %1, %4, %cst {dimension_numbers = #tpu.dot_dimension_numbers<[1], [0], [0], [1], [0, 0, 1, 1], [], []>} : vector<16x128xf32>, vector<128x128xf32>, vector<16x128xf32> -> vector<16x128xf32>
    %c0_7 = arith.constant 0 : index
    %c0_8 = arith.constant 0 : index
    %6 = vector.load %arg4[%c0_7, %c0_8] : memref<1x128xf32, #tpu.memory_space<vmem>>, vector<1x128xf32>
    %7 = vector.broadcast %6 : vector<1x128xf32> to vector<16x128xf32>
    %8 = arith.addf %5, %7 : vector<16x128xf32>
    %c0_9 = arith.constant 0 : index
    %c0_10 = arith.constant 0 : index
    %9 = vector.load %arg5[%c0_9, %c0_10] : memref<128x128xf32, #tpu.memory_space<vmem>>, vector<128x128xf32>
    %cst_11 = arith.constant dense<0.000000e+00> : vector<256x128xf32>
    %10 = tpu.matmul %3, %9, %cst_11 {dimension_numbers = #tpu.dot_dimension_numbers<[1], [0], [0], [1], [0, 0, 1, 1], [], []>} : vector<256x128xf32>, vector<128x128xf32>, vector<256x128xf32> -> vector<256x128xf32>
    %c0_12 = arith.constant 0 : index
    %c0_13 = arith.constant 0 : index
    %11 = vector.load %arg6[%c0_12, %c0_13] : memref<1x128xf32, #tpu.memory_space<vmem>>, vector<1x128xf32>
    %12 = vector.broadcast %11 : vector<1x128xf32> to vector<256x128xf32>
    %13 = arith.addf %10, %12 : vector<256x128xf32>
    %14 = vector.shape_cast %8 : vector<16x128xf32> to vector<2x8x128xf32>
    %15 = vector.shape_cast %13 : vector<256x128xf32> to vector<2x128x128xf32>
    %cst_14 = arith.constant dense<0.000000e+00> : vector<2x8x128xf32>
    %16 = tpu.matmul %14, %15, %cst_14 {dimension_numbers = #tpu.dot_dimension_numbers<[2], [2], [1], [1], [0, 0, 0, 1, 1, 1], [0], [0]>} : vector<2x8x128xf32>, vector<2x128x128xf32>, vector<2x8x128xf32> -> vector<2x8x128xf32>
    %c0_15 = arith.constant 0 : index
    %c0_16 = arith.constant 0 : index
    %c0_17 = arith.constant 0 : index
    %17 = vector.load %arg7[%c0_15, %c0_16, %c0_17] : memref<2x8x128xf32, #tpu.memory_space<vmem>>, vector<2x8x128xf32>
    tpu.vector_store %arg7[%c0_15, %c0_16, %c0_17], %16 {strides = array<i32>} : memref<2x8x128xf32, #tpu.memory_space<vmem>>, vector<2x8x128xf32>,
    return
  }
  func.func @transform_0(%arg0: i32) -> (i32, i32, i32) {
    %c0_i32 = arith.constant 0 : i32
    %c0_i32_0 = arith.constant 0 : i32
    %c0_i32_1 = arith.constant 0 : i32
    return %arg0, %c0_i32, %c0_i32_0 : i32, i32, i32
  }
  func.func @transform_1(%arg0: i32) -> (i32, i32, i32) {
    %c0_i32 = arith.constant 0 : i32
    %c0_i32_0 = arith.constant 0 : i32
    %c0_i32_1 = arith.constant 0 : i32
    return %arg0, %c0_i32, %c0_i32_0 : i32, i32, i32
  }
  func.func @transform_2(%arg0: i32) -> (i32, i32) {
    %c0_i32 = arith.constant 0 : i32
    %c0_i32_0 = arith.constant 0 : i32
    %c0_i32_1 = arith.constant 0 : i32
    return %c0_i32, %c0_i32_0 : i32, i32
  }
  func.func @transform_3(%arg0: i32) -> (i32, i32) {
    %c0_i32 = arith.constant 0 : i32
    %c0_i32_0 = arith.constant 0 : i32
    %c0_i32_1 = arith.constant 0 : i32
    return %c0_i32, %c0_i32_0 : i32, i32
  }
  func.func @transform_4(%arg0: i32) -> (i32, i32) {
    %c0_i32 = arith.constant 0 : i32
    %c0_i32_0 = arith.constant 0 : i32
    %c0_i32_1 = arith.constant 0 : i32
    return %c0_i32, %c0_i32_0 : i32, i32
  }
  func.func @transform_5(%arg0: i32) -> (i32, i32) {
    %c0_i32 = arith.constant 0 : i32
    %c0_i32_0 = arith.constant 0 : i32
    %c0_i32_1 = arith.constant 0 : i32
    return %c0_i32, %c0_i32_0 : i32, i32
  }
  func.func @transform_6(%arg0: i32) -> (i32, i32, i32) {
    %c0_i32 = arith.constant 0 : i32
    %c0_i32_0 = arith.constant 0 : i32
    %c0_i32_1 = arith.constant 0 : i32
    return %arg0, %c0_i32, %c0_i32_0 : i32, i32, i32
  }
}

</mosaic_0001>

<llo_original>
// kernel: tpu_custom_call.1
$region0: #{tpu_custom_call.1}
  #allocation0 [shape = 'u32[]', space=smem, size = 0x4, offset = 0x4, fixed_abs, tag = 'smem constant byte address 0x4 - core index']
  #allocation1 [shape = 'u32[72,128]{1,0:T(1,128)}', space=vmem, size = 0x9000, scoped, tag = 'internal scratch']
  %s0 = inlined_call_operand.hbm [shape: f32[2,8,128], index: 0, kind: input, shape index: {}]
  %s1 = inlined_call_operand.hbm [shape: f32[2,128,128], index: 1, kind: input, shape index: {}]
  %s2 = inlined_call_operand.hbm [shape: f32[128,128], index: 2, kind: input, shape index: {}]
  %s3 = inlined_call_operand.vmem [shape: f32[1,128], index: 3, kind: input, shape index: {}]
  %s4 = inlined_call_operand.hbm [shape: f32[128,128], index: 4, kind: input, shape index: {}]
  %s5 = inlined_call_operand.vmem [shape: f32[1,128], index: 5, kind: input, shape index: {}]
  %s6 = inlined_call_operand.hbm [shape: f32[2,8,128], index: 6, kind: output, shape index: {}]
  %s7 = sld [smem:[#allocation0]]
  $region50: #{tpu_custom_call.1} parent=0
    _
  %s9 = ssub.s32 1, %s7
  %s10 = scalar_select 0, %s9, %s7
  $region1: #{tpu_custom_call.1} parent=0
    #allocation2 [shape = 'u8[8192]{0}', space=vmem, size = 0x2000, scoped, tag = 'input window, operand 0, single buffered']
    #allocation3 [shape = 's32[1]{0}', space=sflag, size = 0x4, scoped, tag = 'scoped memory for tpu_custom_call.1']
    #allocation4 [shape = 's32[1]{0}', space=sflag, size = 0x4, scoped, tag = 'scoped memory for tpu_custom_call.1']
    #allocation5 [shape = 'u8[131072]{0}', space=vmem, size = 0x20000, scoped, tag = 'input window, operand 1, single buffered']
    #allocation6 [shape = 's32[1]{0}', space=sflag, size = 0x4, scoped, tag = 'scoped memory for tpu_custom_call.1']
    #allocation7 [shape = 'u8[65536]{0}', space=vmem, size = 0x10000, scoped, tag = 'input window, operand 2, single buffered']
    #allocation8 [shape = 'u8[65536]{0}', space=vmem, size = 0x10000, scoped, tag = 'input window, operand 4, single buffered']
    #allocation9 [shape = 's32[1]{0}', space=sflag, size = 0x4, scoped, tag = 'scoped memory for tpu_custom_call.1']
    #allocation10 [shape = 'u8[8192]{0}', space=vmem, size = 0x2000, scoped, tag = 'output window, operand 0, single buffered']
    %11 = vsyncpa [#allocation3], 0
    %12 = vsyncpa [#allocation6], 0
    %13 = vsyncpa [#allocation9], 0
    %14 = vsyncpa [#allocation4], 0
    // Predicated region
    $region2: #{tpu_custom_call.1} parent=1 // pred_check
      _
    $region3: #{tpu_custom_call.1} parent=1 // pred_check_branch
      %16 = sbr.rel (0) target = $region5
    $region4: #{tpu_custom_call.1} parent=1 // pred_region
      %18 = vsyncadd [#allocation3], 0
      %s19 = sshll.u32 %s0, 4
      %s20 = int_to_ptr.hbm [resolvable:$true] %s19
      %s21 = sshll.u32 [#allocation2], 4
      %s22 = int_to_ptr.vmem [resolvable:$true] %s21
      %27 = dma.hbm_to_vmem [thread:$0]  %s20, 256, %s22, [#allocation3], 128, 128, 8
    $region5: #{tpu_custom_call.1} parent=1 // pred_fallthru
      _
    // Predicated region
    $region6: #{tpu_custom_call.1} parent=1 // pred_check
      _
    $region7: #{tpu_custom_call.1} parent=1 // pred_check_branch
      %29 = sbr.rel (0) target = $region9
    $region8: #{tpu_custom_call.1} parent=1 // pred_region
      %31 = vsyncadd [#allocation6], 0
      %s32 = sshll.u32 %s1, 4
      %s33 = int_to_ptr.hbm [resolvable:$true] %s32
      %s34 = sshll.u32 [#allocation5], 4
      %s35 = int_to_ptr.vmem [resolvable:$true] %s34
      %40 = dma.hbm_to_vmem [thread:$0]  %s33, 4096, %s35, [#allocation6], 128, 128, 8
    $region9: #{tpu_custom_call.1} parent=1 // pred_fallthru
      _
    // Predicated region
    $region10: #{tpu_custom_call.1} parent=1 // pred_check
      _
    $region11: #{tpu_custom_call.1} parent=1 // pred_check_branch
      %42 = sbr.rel (0) target = $region13
    $region12: #{tpu_custom_call.1} parent=1 // pred_region
      %44 = vsyncadd [#allocation6], 0
      %s45 = sshll.u32 %s2, 4
      %s46 = int_to_ptr.hbm [resolvable:$true] %s45
      %s47 = sshll.u32 [#allocation7], 4
      %s48 = int_to_ptr.vmem [resolvable:$true] %s47
      %53 = dma.hbm_to_vmem [thread:$0]  %s46, 2048, %s48, [#allocation6], 128, 128, 8
    $region13: #{tpu_custom_call.1} parent=1 // pred_fallthru
      _
    // Predicated region
    $region14: #{tpu_custom_call.1} parent=1 // pred_check
      _
    $region15: #{tpu_custom_call.1} parent=1 // pred_check_branch
      %55 = sbr.rel (0) target = $region17
    $region16: #{tpu_custom_call.1} parent=1 // pred_region
      _
    $region17: #{tpu_custom_call.1} parent=1 // pred_fallthru
      _
    // Predicated region
    $region18: #{tpu_custom_call.1} parent=1 // pred_check
      _
    $region19: #{tpu_custom_call.1} parent=1 // pred_check_branch
      %57 = sbr.rel (0) target = $region21
    $region20: #{tpu_custom_call.1} parent=1 // pred_region
      %59 = vsyncadd [#allocation9], 0
      %s60 = sshll.u32 %s4, 4
      %s61 = int_to_ptr.hbm [resolvable:$true] %s60
      %s62 = sshll.u32 [#allocation8], 4
      %s63 = int_to_ptr.vmem [resolvable:$true] %s62
      %68 = dma.hbm_to_vmem [thread:$0]  %s61, 2048, %s63, [#allocation9], 128, 128, 8
    $region21: #{tpu_custom_call.1} parent=1 // pred_fallthru
      _
    // Predicated region
    $region22: #{tpu_custom_call.1} parent=1 // pred_check
      _
    $region23: #{tpu_custom_call.1} parent=1 // pred_check_branch
      %70 = sbr.rel (0) target = $region25
    $region24: #{tpu_custom_call.1} parent=1 // pred_region
      _
    $region25: #{tpu_custom_call.1} parent=1 // pred_fallthru
      _
    // Predicated region
    $region26: #{tpu_custom_call.1} parent=1 // pred_check
      _
    $region27: #{tpu_custom_call.1} parent=1 // pred_check_branch
      %72 = sbr.rel (0) target = $region29
    $region28: #{tpu_custom_call.1} parent=1 // pred_region
      %74 = dma.done [#allocation3], 256
    $region29: #{tpu_custom_call.1} parent=1 // pred_fallthru
      _
    // Predicated region
    $region30: #{tpu_custom_call.1} parent=1 // pred_check
      _
    $region31: #{tpu_custom_call.1} parent=1 // pred_check_branch
      %76 = sbr.rel (0) target = $region33
    $region32: #{tpu_custom_call.1} parent=1 // pred_region
      %78 = dma.done [#allocation6], 4096
    $region33: #{tpu_custom_call.1} parent=1 // pred_fallthru
      _
    // Predicated region
    $region34: #{tpu_custom_call.1} parent=1 // pred_check
      _
    $region35: #{tpu_custom_call.1} parent=1 // pred_check_branch
      %80 = sbr.rel (0) target = $region37
    $region36: #{tpu_custom_call.1} parent=1 // pred_region
      %82 = dma.done [#allocation6], 2048
    $region37: #{tpu_custom_call.1} parent=1 // pred_fallthru
      _
    // Predicated region
    $region38: #{tpu_custom_call.1} parent=1 // pred_check
      _
    $region39: #{tpu_custom_call.1} parent=1 // pred_check_branch
      %84 = sbr.rel (0) target = $region41
    $region40: #{tpu_custom_call.1} parent=1 // pred_region
      %86 = dma.done [#allocation9], 2048
    $region41: #{tpu_custom_call.1} parent=1 // pred_fallthru
      _
    %v87 = vld [vmem:[#allocation2] sm:$0xff]
    %v88 = vld [vmem:[#allocation2 + $0x8] sm:$0xff]
    %v89 = vld [vmem:[#allocation5] sm:$0xff]
    %v90 = vld [vmem:[#allocation5 + $0x8] sm:$0xff]
    %v91 = vld [vmem:[#allocation5 + $0x10] sm:$0xff]
    %v92 = vld [vmem:[#allocation5 + $0x18] sm:$0xff]
    %v93 = vld [vmem:[#allocation5 + $0x20] sm:$0xff]
    %v94 = vld [vmem:[#allocation5 + $0x28] sm:$0xff]
    %v95 = vld [vmem:[#allocation5 + $0x30] sm:$0xff]
    %v96 = vld [vmem:[#allocation5 + $0x38] sm:$0xff]
    %v97 = vld [vmem:[#allocation5 + $0x40] sm:$0xff]
    %v98 = vld [vmem:[#allocation5 + $0x48] sm:$0xff]
    %v99 = vld [vmem:[#allocation5 + $0x50] sm:$0xff]
    %v100 = vld [vmem:[#allocation5 + $0x58] sm:$0xff]
    %v101 = vld [vmem:[#allocation5 + $0x60] sm:$0xff]
    %v102 = vld [vmem:[#allocation5 + $0x68] sm:$0xff]
    %v103 = vld [vmem:[#allocation5 + $0x70] sm:$0xff]
    %v104 = vld [vmem:[#allocation5 + $0x78] sm:$0xff]
    %v105 = vld [vmem:[#allocation5 + $0x80] sm:$0xff]
    %v106 = vld [vmem:[#allocation5 + $0x88] sm:$0xff]
    %v107 = vld [vmem:[#allocation5 + $0x90] sm:$0xff]
    %v108 = vld [vmem:[#allocation5 + $0x98] sm:$0xff]
    %v109 = vld [vmem:[#allocation5 + $0xa0] sm:$0xff]
    %v110 = vld [vmem:[#allocation5 + $0xa8] sm:$0xff]
    %v111 = vld [vmem:[#allocation5 + $0xb0] sm:$0xff]
    %v112 = vld [vmem:[#allocation5 + $0xb8] sm:$0xff]
    %v113 = vld [vmem:[#allocation5 + $0xc0] sm:$0xff]
    %v114 = vld [vmem:[#allocation5 + $0xc8] sm:$0xff]
    %v115 = vld [vmem:[#allocation5 + $0xd0] sm:$0xff]
    %v116 = vld [vmem:[#allocation5 + $0xd8] sm:$0xff]
    %v117 = vld [vmem:[#allocation5 + $0xe0] sm:$0xff]
    %v118 = vld [vmem:[#allocation5 + $0xe8] sm:$0xff]
    %v119 = vld [vmem:[#allocation5 + $0xf0] sm:$0xff]
    %v120 = vld [vmem:[#allocation5 + $0xf8] sm:$0xff]
    %v121 = vld [vmem:[#allocation7] sm:$0xff]
    %v122 = vld [vmem:[#allocation7 + $0x8] sm:$0xff]
    %v123 = vld [vmem:[#allocation7 + $0x10] sm:$0xff]
    %v124 = vld [vmem:[#allocation7 + $0x18] sm:$0xff]
    %v125 = vld [vmem:[#allocation7 + $0x20] sm:$0xff]
    %v126 = vld [vmem:[#allocation7 + $0x28] sm:$0xff]
    %v127 = vld [vmem:[#allocation7 + $0x30] sm:$0xff]
    %v128 = vld [vmem:[#allocation7 + $0x38] sm:$0xff]
    %v129 = vld [vmem:[#allocation7 + $0x40] sm:$0xff]
    %v130 = vld [vmem:[#allocation7 + $0x48] sm:$0xff]
    %v131 = vld [vmem:[#allocation7 + $0x50] sm:$0xff]
    %v132 = vld [vmem:[#allocation7 + $0x58] sm:$0xff]
    %v133 = vld [vmem:[#allocation7 + $0x60] sm:$0xff]
    %v134 = vld [vmem:[#allocation7 + $0x68] sm:$0xff]
    %v135 = vld [vmem:[#allocation7 + $0x70] sm:$0xff]
    %v136 = vld [vmem:[#allocation7 + $0x78] sm:$0xff]
    %v137 = vld [vmem:[%s3] sm:$0x1]
    %v139 = vperm.slane %v137, 0
    %141 = vmatpush.msra.mxu0 %v136
    %142 = vmatpush.msra.mxu0 %v135
    %143 = vmatpush.msra.mxu0 %v134
    %144 = vmatpush.msra.mxu0 %v133
    %145 = vmatpush.msra.mxu0 %v132
    %146 = vmatpush.msra.mxu0 %v131
    %147 = vmatpush.msra.mxu0 %v130
    %148 = vmatpush.msra.mxu0 %v129
    %149 = vmatpush.msra.mxu0 %v128
    %150 = vmatpush.msra.mxu0 %v127
    %151 = vmatpush.msra.mxu0 %v126
    %152 = vmatpush.msra.mxu0 %v125
    %153 = vmatpush.msra.mxu0 %v124
    %154 = vmatpush.msra.mxu0 %v123
    %155 = vmatpush.msra.mxu0 %v122
    %156 = vmatpush.msra.mxu0 %v121
    %157 = vmatmul.f32.gmra.mxu0 %v87
    %v158 = vpop.f32.mrf.mxu0
    %v159 = vadd.f32 %v139, %v158
    %160 = vmatmul.f32.gmra.mxu0 %v88
    %v161 = vpop.f32.mrf.mxu0
    %v162 = vadd.f32 %v139, %v161
    %163 = vdwg.mxu0
    %v164 = vld [vmem:[#allocation8] sm:$0xff]
    %v165 = vld [vmem:[#allocation8 + $0x8] sm:$0xff]
    %v166 = vld [vmem:[#allocation8 + $0x10] sm:$0xff]
    %v167 = vld [vmem:[#allocation8 + $0x18] sm:$0xff]
    %v168 = vld [vmem:[#allocation8 + $0x20] sm:$0xff]
    %v169 = vld [vmem:[#allocation8 + $0x28] sm:$0xff]
    %v170 = vld [vmem:[#allocation8 + $0x30] sm:$0xff]
    %v171 = vld [vmem:[#allocation8 + $0x38] sm:$0xff]
    %v172 = vld [vmem:[#allocation8 + $0x40] sm:$0xff]
    %v173 = vld [vmem:[#allocation8 + $0x48] sm:$0xff]
    %v174 = vld [vmem:[#allocation8 + $0x50] sm:$0xff]
    %v175 = vld [vmem:[#allocation8 + $0x58] sm:$0xff]
    %v176 = vld [vmem:[#allocation8 + $0x60] sm:$0xff]
    %v177 = vld [vmem:[#allocation8 + $0x68] sm:$0xff]
    %v178 = vld [vmem:[#allocation8 + $0x70] sm:$0xff]
    %v179 = vld [vmem:[#allocation8 + $0x78] sm:$0xff]
    %v180 = vld [vmem:[%s5] sm:$0x1]
    %v182 = vperm.slane %v180, 0
    %184 = vmatpush.msra.mxu0 %v179
    %185 = vmatpush.msra.mxu0 %v178
    %186 = vmatpush.msra.mxu0 %v177
    %187 = vmatpush.msra.mxu0 %v176
    %188 = vmatpush.msra.mxu0 %v175
    %189 = vmatpush.msra.mxu0 %v174
    %190 = vmatpush.msra.mxu0 %v173
    %191 = vmatpush.msra.mxu0 %v172
    %192 = vmatpush.msra.mxu0 %v171
    %193 = vmatpush.msra.mxu0 %v170
    %194 = vmatpush.msra.mxu0 %v169
    %195 = vmatpush.msra.mxu0 %v168
    %196 = vmatpush.msra.mxu0 %v167
    %197 = vmatpush.msra.mxu0 %v166
    %198 = vmatpush.msra.mxu0 %v165
    %199 = vmatpush.msra.mxu0 %v164
    %200 = vmatmul.f32.gmra.mxu0 %v89
    %v201 = vpop.f32.mrf.mxu0
    %v202 = vadd.f32 %v182, %v201
    %203 = vmatmul.f32.gmra.mxu0 %v90
    %v204 = vpop.f32.mrf.mxu0
    %v205 = vadd.f32 %v182, %v204
    %206 = vmatmul.f32.gmra.mxu0 %v91
    %v207 = vpop.f32.mrf.mxu0
    %v208 = vadd.f32 %v182, %v207
    %209 = vmatmul.f32.gmra.mxu0 %v92
    %v210 = vpop.f32.mrf.mxu0
    %v211 = vadd.f32 %v182, %v210
    %212 = vmatmul.f32.gmra.mxu0 %v93
    %v213 = vpop.f32.mrf.mxu0
    %v214 = vadd.f32 %v182, %v213
    %215 = vmatmul.f32.gmra.mxu0 %v94
    %v216 = vpop.f32.mrf.mxu0
    %v217 = vadd.f32 %v182, %v216
    %218 = vmatmul.f32.gmra.mxu0 %v95
    %v219 = vpop.f32.mrf.mxu0
    %v220 = vadd.f32 %v182, %v219
    %221 = vmatmul.f32.gmra.mxu0 %v96
    %v222 = vpop.f32.mrf.mxu0
    %v223 = vadd.f32 %v182, %v222
    %224 = vmatmul.f32.gmra.mxu0 %v97
    %v225 = vpop.f32.mrf.mxu0
    %v226 = vadd.f32 %v182, %v225
    %227 = vmatmul.f32.gmra.mxu0 %v98
    %v228 = vpop.f32.mrf.mxu0
    %v229 = vadd.f32 %v182, %v228
    %230 = vmatmul.f32.gmra.mxu0 %v99
    %v231 = vpop.f32.mrf.mxu0
    %v232 = vadd.f32 %v182, %v231
    %233 = vmatmul.f32.gmra.mxu0 %v100
    %v234 = vpop.f32.mrf.mxu0
    %v235 = vadd.f32 %v182, %v234
    %236 = vmatmul.f32.gmra.mxu0 %v101
    %v237 = vpop.f32.mrf.mxu0
    %v238 = vadd.f32 %v182, %v237
    %239 = vmatmul.f32.gmra.mxu0 %v102
    %v240 = vpop.f32.mrf.mxu0
    %v241 = vadd.f32 %v182, %v240
    %242 = vmatmul.f32.gmra.mxu0 %v103
    %v243 = vpop.f32.mrf.mxu0
    %v244 = vadd.f32 %v182, %v243
    %245 = vmatmul.f32.gmra.mxu0 %v104
    %v246 = vpop.f32.mrf.mxu0
    %v247 = vadd.f32 %v182, %v246
    %248 = vmatmul.f32.gmra.mxu0 %v105
    %v249 = vpop.f32.mrf.mxu0
    %v250 = vadd.f32 %v182, %v249
    %251 = vmatmul.f32.gmra.mxu0 %v106
    %v252 = vpop.f32.mrf.mxu0
    %v253 = vadd.f32 %v182, %v252
    %254 = vmatmul.f32.gmra.mxu0 %v107
    %v255 = vpop.f32.mrf.mxu0
    %v256 = vadd.f32 %v182, %v255
    %257 = vmatmul.f32.gmra.mxu0 %v108
    %v258 = vpop.f32.mrf.mxu0
    %v259 = vadd.f32 %v182, %v258
    %260 = vmatmul.f32.gmra.mxu0 %v109
    %v261 = vpop.f32.mrf.mxu0
    %v262 = vadd.f32 %v182, %v261
    %263 = vmatmul.f32.gmra.mxu0 %v110
    %v264 = vpop.f32.mrf.mxu0
    %v265 = vadd.f32 %v182, %v264
    %266 = vmatmul.f32.gmra.mxu0 %v111
    %v267 = vpop.f32.mrf.mxu0
    %v268 = vadd.f32 %v182, %v267
    %269 = vmatmul.f32.gmra.mxu0 %v112
    %v270 = vpop.f32.mrf.mxu0
    %v271 = vadd.f32 %v182, %v270
    %272 = vmatmul.f32.gmra.mxu0 %v113
    %v273 = vpop.f32.mrf.mxu0
    %v274 = vadd.f32 %v182, %v273
    %275 = vmatmul.f32.gmra.mxu0 %v114
    %v276 = vpop.f32.mrf.mxu0
    %v277 = vadd.f32 %v182, %v276
    %278 = vmatmul.f32.gmra.mxu0 %v115
    %v279 = vpop.f32.mrf.mxu0
    %v280 = vadd.f32 %v182, %v279
    %281 = vmatmul.f32.gmra.mxu0 %v116
    %v282 = vpop.f32.mrf.mxu0
    %v283 = vadd.f32 %v182, %v282
    %284 = vmatmul.f32.gmra.mxu0 %v117
    %v285 = vpop.f32.mrf.mxu0
    %v286 = vadd.f32 %v182, %v285
    %287 = vmatmul.f32.gmra.mxu0 %v118
    %v288 = vpop.f32.mrf.mxu0
    %v289 = vadd.f32 %v182, %v288
    %290 = vmatmul.f32.gmra.mxu0 %v119
    %v291 = vpop.f32.mrf.mxu0
    %v292 = vadd.f32 %v182, %v291
    %293 = vmatmul.f32.gmra.mxu0 %v120
    %v294 = vpop.f32.mrf.mxu0
    %v295 = vadd.f32 %v182, %v294
    %296 = vdwg.mxu0
    %297 = vmatpush.xpose.msra.mxu0 %v247
    %298 = vmatpush.xpose.msra.mxu0 %v244
    %299 = vmatpush.xpose.msra.mxu0 %v241
    %300 = vmatpush.xpose.msra.mxu0 %v238
    %301 = vmatpush.xpose.msra.mxu0 %v235
    %302 = vmatpush.xpose.msra.mxu0 %v232
    %303 = vmatpush.xpose.msra.mxu0 %v229
    %304 = vmatpush.xpose.msra.mxu0 %v226
    %305 = vmatpush.xpose.msra.mxu0 %v223
    %306 = vmatpush.xpose.msra.mxu0 %v220
    %307 = vmatpush.xpose.msra.mxu0 %v217
    %308 = vmatpush.xpose.msra.mxu0 %v214
    %309 = vmatpush.xpose.msra.mxu0 %v211
    %310 = vmatpush.xpose.msra.mxu0 %v208
    %311 = vmatpush.xpose.msra.mxu0 %v205
    %312 = vmatpush.xpose.msra.mxu0 %v202
    %313 = vmatmul.f32.gmra.mxu0 %v159
    %v314 = vpop.f32.mrf.mxu0
    %v315 = vadd.f32 0.0, %v314
    %316 = vdwg.mxu0
    %317 = vmatpush.xpose.msra.mxu0 %v295
    %318 = vmatpush.xpose.msra.mxu0 %v292
    %319 = vmatpush.xpose.msra.mxu0 %v289
    %320 = vmatpush.xpose.msra.mxu0 %v286
    %321 = vmatpush.xpose.msra.mxu0 %v283
    %322 = vmatpush.xpose.msra.mxu0 %v280
    %323 = vmatpush.xpose.msra.mxu0 %v277
    %324 = vmatpush.xpose.msra.mxu0 %v274
    %325 = vmatpush.xpose.msra.mxu0 %v271
    %326 = vmatpush.xpose.msra.mxu0 %v268
    %327 = vmatpush.xpose.msra.mxu0 %v265
    %328 = vmatpush.xpose.msra.mxu0 %v262
    %329 = vmatpush.xpose.msra.mxu0 %v259
    %330 = vmatpush.xpose.msra.mxu0 %v256
    %331 = vmatpush.xpose.msra.mxu0 %v253
    %332 = vmatpush.xpose.msra.mxu0 %v250
    %333 = vmatmul.f32.gmra.mxu0 %v162
    %v334 = vpop.f32.mrf.mxu0
    %v335 = vadd.f32 0.0, %v334
    %336 = vdwg.mxu0
    %337 = vst [vmem:[#allocation10] sm:$0xff] %v315
    %338 = vst [vmem:[#allocation10 + $0x8] sm:$0xff] %v335
    // Predicated region
    $region42: #{tpu_custom_call.1} parent=1 // pred_check
      _
    $region43: #{tpu_custom_call.1} parent=1 // pred_check_branch
      %340 = sbr.rel (0) target = $region45
    $region44: #{tpu_custom_call.1} parent=1 // pred_region
      %342 = vsyncadd [#allocation4], 0
      %s343 = sshll.u32 [#allocation10], 4
      %s344 = int_to_ptr.vmem [resolvable:$true] %s343
      %s345 = sshll.u32 %s6, 4
      %s346 = int_to_ptr.hbm [resolvable:$true] %s345
      %351 = dma.vmem_to_hbm [thread:$0]  %s344, 256, %s346, [#allocation4], 128, 128, 8
    $region45: #{tpu_custom_call.1} parent=1 // pred_fallthru
      _
    // Predicated region
    $region46: #{tpu_custom_call.1} parent=1 // pred_check
      _
    $region47: #{tpu_custom_call.1} parent=1 // pred_check_branch
      %353 = sbr.rel (0) target = $region49
    $region48: #{tpu_custom_call.1} parent=1 // pred_region
      %355 = dma.done [#allocation4], 256
    $region49: #{tpu_custom_call.1} parent=1 // pred_fallthru
      _
    %356 = vsyncpa [#allocation3], 1
    %357 = vsyncpa [#allocation6], 1
    %358 = vsyncpa [#allocation9], 1
    %359 = vsyncpa [#allocation4], 1

</llo_original>
